<compile_context>
chip_gen: v6e
topology: v6e:2x2x1
jax: 0.10.0
libtpu: 0.0.40
codegen_flags: <defaults>
</compile_context>

<pallas_src>
import jax
import jax.numpy as jnp
from jax.experimental import pallas as pl
from jax.experimental.pallas import tpu as pltpu


_VMEM = pl.BlockSpec(memory_space=pltpu.MemorySpace.VMEM)


# ---------------------------------------------------------------------------
# Kernel 1: pseudoinput generation.
# idle_input is eye(K), so eye(K) @ W^T == W^T: this is just hardtanh(W^T, 0, 1).
# Pure VPU clamp -- no MXU, no identity matrix input.
# ---------------------------------------------------------------------------
def _clamp01_kernel(wt_ref, out_ref):
    # nn.Hardtanh(min_val=0.0, max_val=1.0) == clamp to [0, 1]
    out_ref[...] = jnp.clip(wt_ref[...], 0.0, 1.0).astype(out_ref.dtype)


def generate_pseudoinputs(weight_t):
    """weight_t has shape (K, D): the nn.Linear weight (D, K) already transposed at init."""
    K, D = weight_t.shape
    return pl.pallas_call(
        _clamp01_kernel,
        out_shape=jax.ShapeDtypeStruct((K, D), weight_t.dtype),
        in_specs=[_VMEM],
        out_specs=_VMEM,
    )(weight_t)


# ---------------------------------------------------------------------------
# Kernel 2: reparameterize  ->  eps * exp(0.5 * logvar) + mu   (VPU + EUP only)
# ---------------------------------------------------------------------------
def _reparam_kernel(mu_ref, logvar_ref, eps_ref, out_ref):
    std = jnp.exp(logvar_ref[...] * 0.5)
    out_ref[...] = (eps_ref[...] * std + mu_ref[...]).astype(out_ref.dtype)


def _lane_dense(x):
    """Reshape so the last (lane) dim is 128-wide when the total size allows it."""
    n = x.size
    if x.shape[-1] % 128 != 0 and n % 128 == 0:
        return x.reshape(n // 128, 128)
    return x


def reparameterize(mu, logvar, eps):
    orig_shape = mu.shape
    mu_d, lv_d, eps_d = _lane_dense(mu), _lane_dense(logvar), _lane_dense(eps)
    z = pl.pallas_call(
        _reparam_kernel,
        out_shape=jax.ShapeDtypeStruct(mu_d.shape, mu.dtype),
        in_specs=[_VMEM, _VMEM, _VMEM],
        out_specs=_VMEM,
    )(mu_d, lv_d, eps_d)
    return z.reshape(orig_shape)


# ---------------------------------------------------------------------------
# Kernel 3 (fused): single launch producing both pseudoinputs and z.
# Used when both are needed in the same step -> one pallas_call instead of two.
# ---------------------------------------------------------------------------
def _fused_kernel(wt_ref, mu_ref, logvar_ref, eps_ref, pseudo_ref, z_ref):
    pseudo_ref[...] = jnp.clip(wt_ref[...], 0.0, 1.0).astype(pseudo_ref.dtype)
    std = jnp.exp(logvar_ref[...] * 0.5)
    z_ref[...] = (eps_ref[...] * std + mu_ref[...]).astype(z_ref.dtype)


def pseudoinputs_and_reparameterize(weight_t, mu, logvar, eps):
    orig_shape = mu.shape
    mu_d, lv_d, eps_d = _lane_dense(mu), _lane_dense(logvar), _lane_dense(eps)
    pseudo, z = pl.pallas_call(
        _fused_kernel,
        out_shape=(
            jax.ShapeDtypeStruct(weight_t.shape, weight_t.dtype),
            jax.ShapeDtypeStruct(mu_d.shape, mu.dtype),
        ),
        in_specs=[_VMEM, _VMEM, _VMEM, _VMEM],
        out_specs=(_VMEM, _VMEM),
    )(weight_t, mu_d, lv_d, eps_d)
    return pseudo, z.reshape(orig_shape)


# ---------------------------------------------------------------------------
# Model wrapper (parameters initialized deterministically in-script)
# ---------------------------------------------------------------------------
class Model:
    def __init__(self, input_size=40, number_components=10,
                 pseudoinputs_mean=-0.05, pseudoinputs_std=0.01, key=None):
        self.input_size = int(input_size)
        self.number_components = int(number_components)
        self.pseudoinputs_mean = pseudoinputs_mean
        self.pseudoinputs_std = pseudoinputs_std
        self._key = key if key is not None else jax.random.PRNGKey(0)
        self._pseudo_cache = None

    def add_pseudoinputs(self):
        # normal_init(self.means.linear, mean, std): weight ~ N(mean, std), shape (D, K).
        # We sample its transpose (K, D) directly (i.i.d. Gaussian, so identical in
        # distribution) -> no transpose op anywhere in the kernel feed path.
        k_w, self._key = jax.random.split(self._key)
        self.means_weight_t = (
            self.pseudoinputs_mean
            + self.pseudoinputs_std
            * jax.random.normal(
                k_w, (self.number_components, self.input_size), dtype=jnp.float32)
        )
        # Kept only for fidelity with the PyTorch module's attribute layout / ref checks.
        self.means_weight = self.means_weight_t.T            # (D, K), nn.Linear layout
        self.idle_input = jnp.eye(self.number_components, dtype=jnp.float32)
        # Pseudoinputs depend only on the fixed weight: compute once and cache.
        self._pseudo_cache = generate_pseudoinputs(self.means_weight_t)

    def pseudoinputs(self):
        # == self.means(self.idle_input) in the PyTorch module (cached, one-time kernel).
        if self._pseudo_cache is None:
            self._pseudo_cache = generate_pseudoinputs(self.means_weight_t)
        return self._pseudo_cache

    def reparameterize(self, mu, logvar, eps):
        return reparameterize(mu, logvar, eps)

    def pseudoinputs_and_reparameterize(self, mu, logvar, eps):
        return pseudoinputs_and_reparameterize(self.means_weight_t, mu, logvar, eps)

    def forward(self, x):
        # PyTorch forward literally returns 0.0
        return jnp.float32(0.0)


if __name__ == "__main__":
    key = jax.random.PRNGKey(0)
    k_model, k_x, k_mu, k_lv, k_eps = jax.random.split(key, 5)

    model = Model(input_size=40, number_components=10, key=k_model)
    model.add_pseudoinputs()

    # Pseudoinput path: hardtanh(eye(K) @ W^T) == hardtanh(W^T), K=10, D=40 (cached at init).
    pseudo = model.pseudoinputs()
    jax.block_until_ready(pseudo)
    assert pseudo.shape == (10, 40)
    assert bool(jnp.all(pseudo >= 0.0)) and bool(jnp.all(pseudo <= 1.0))
    pseudo_ref = jnp.clip(model.idle_input @ model.means_weight.T, 0.0, 1.0)
    assert bool(jnp.allclose(pseudo, pseudo_ref, atol=1e-6))

    # Reparameterize hot path on a small latent batch (batch=8, latent=32),
    # reshaped lane-dense to (2, 128) inside the wrapper.
    mu = jax.random.normal(k_mu, (8, 32), dtype=jnp.float32)
    logvar = jax.random.normal(k_lv, (8, 32), dtype=jnp.float32)
    eps = jax.random.normal(k_eps, (8, 32), dtype=jnp.float32)
    z = model.reparameterize(mu, logvar, eps)
    jax.block_until_ready(z)
    z_ref = eps * jnp.exp(0.5 * logvar) + mu
    assert z.shape == (8, 32)
    assert bool(jnp.allclose(z, z_ref, atol=1e-6))

    # Fused single-launch path: both outputs from one pallas_call.
    pseudo_f, z_f = model.pseudoinputs_and_reparameterize(mu, logvar, eps)
    jax.block_until_ready(z_f)
    assert bool(jnp.allclose(pseudo_f, pseudo_ref, atol=1e-6))
    assert bool(jnp.allclose(z_f, z_ref, atol=1e-6))

    # forward(x) -> 0.0, exactly as in the PyTorch module
    x = jax.random.normal(k_x, (2, 40), dtype=jnp.float32)
    out = model.forward(x)
    jax.block_until_ready(out)
    assert float(out) == 0.0

    print("KERNEL_OK")
</pallas_src>

<mosaic_0001>
module attributes {stable_mosaic.version = 11 : i64} {
  func.func @_clamp01_kernel(%arg0: memref<10x40xf32, #tpu.memory_space<vmem>>, %arg1: memref<10x40xf32, #tpu.memory_space<vmem>>) attributes {dimension_semantics = [], scalar_prefetch = 0 : i64, scratch_operands = 0 : i64, tpu.core_type = #tpu.core_type<tc>} {
    %c0 = arith.constant 0 : index
    %c0_0 = arith.constant 0 : index
    %0 = vector.load %arg0[%c0, %c0_0] : memref<10x40xf32, #tpu.memory_space<vmem>>, vector<10x40xf32>
    %cst = arith.constant 0.000000e+00 : f32
    %cst_1 = arith.constant 1.000000e+00 : f32
    %1 = vector.broadcast %cst : f32 to vector<10x40xf32>
    %2 = arith.maximumf %1, %0 : vector<10x40xf32>
    %3 = vector.broadcast %cst_1 : f32 to vector<10x40xf32>
    %4 = arith.minimumf %3, %2 : vector<10x40xf32>
    %c0_2 = arith.constant 0 : index
    %c0_3 = arith.constant 0 : index
    %5 = vector.load %arg1[%c0_2, %c0_3] : memref<10x40xf32, #tpu.memory_space<vmem>>, vector<10x40xf32>
    tpu.vector_store %arg1[%c0_2, %c0_3], %4 {strides = array<i32>} : memref<10x40xf32, #tpu.memory_space<vmem>>, vector<10x40xf32>,
    return
  }
}

</mosaic_0001>

<llo_original>
// kernel: tpu_custom_call.1
$region0: #{tpu_custom_call.1}
  #allocation0 [shape = 'u32[]', space=smem, size = 0x4, offset = 0x4, fixed_abs, tag = 'smem constant byte address 0x4 - core index']
  #allocation1 [shape = 'u32[144,128]{1,0:T(1,128)}', space=vmem, size = 0x12000, scoped, tag = 'internal scratch']
  %s0 = inlined_call_operand.hbm [shape: f32[10,40], index: 0, kind: input, shape index: {}]
  %s1 = inlined_call_operand.hbm [shape: f32[10,40], index: 1, kind: output, shape index: {}]
  %s2 = sld [smem:[#allocation0]]
  $region18: #{tpu_custom_call.1} parent=0
    _
  %s4 = ssub.s32 1, %s2
  %s5 = scalar_select 0, %s4, %s2
  $region1: #{tpu_custom_call.1} parent=0
    #allocation2 [shape = 'u8[8192]{0}', space=vmem, size = 0x2000, scoped, tag = 'input window, operand 0, single buffered']
    #allocation3 [shape = 's32[1]{0}', space=sflag, size = 0x4, scoped, tag = 'scoped memory for tpu_custom_call.1']
    #allocation4 [shape = 's32[1]{0}', space=sflag, size = 0x4, scoped, tag = 'scoped memory for tpu_custom_call.1']
    #allocation5 [shape = 'u8[8192]{0}', space=vmem, size = 0x2000, scoped, tag = 'output window, operand 0, single buffered']
    %6 = vsyncpa [#allocation3], 0
    %7 = vsyncpa [#allocation4], 0
    // Predicated region
    $region2: #{tpu_custom_call.1} parent=1 // pred_check
      _
    $region3: #{tpu_custom_call.1} parent=1 // pred_check_branch
      %9 = sbr.rel (0) target = $region5
    $region4: #{tpu_custom_call.1} parent=1 // pred_region
      %s11 = ssub.s32 256, 256
      %12 = vsyncadd [#allocation3], %s11
      %s13 = sshll.u32 [#allocation2], 4
      %s14 = int_to_ptr.vmem [resolvable:$true] %s13
      %19 = dma.hbm_to_vmem [thread:$0]  %s0, 256, %s14, [#allocation3], 128, 128, 8
    $region5: #{tpu_custom_call.1} parent=1 // pred_fallthru
      _
    // Predicated region
    $region6: #{tpu_custom_call.1} parent=1 // pred_check
      _
    $region7: #{tpu_custom_call.1} parent=1 // pred_check_branch
      %21 = sbr.rel (0) target = $region9
    $region8: #{tpu_custom_call.1} parent=1 // pred_region
      %22 = dma.done [#allocation3], 256
    $region9: #{tpu_custom_call.1} parent=1 // pred_fallthru
      _
    %v23 = vld [vmem:[#allocation2] sm:$0xff]
    %v24 = vld [vmem:[#allocation2 + $0x8] sm:$0x3]
    %v25 = vmax.f32 %v23, 0.0
    %v26 = vmax.f32 %v24, 0.0
    %v27 = vmin.f32 %v25, 1.0
    %v28 = vmin.f32 %v26, 1.0
    %vm29 = vcmask 326656
    %30 = vst.msk [vmem:[#allocation5] sm:$0xff] %vm29, %v27
    %vm31 = vcmask 320512
    %32 = vst.msk [vmem:[#allocation5 + $0x8] sm:$0x3] %vm31, %v28
    // Predicated region
    $region10: #{tpu_custom_call.1} parent=1 // pred_check
      _
    $region11: #{tpu_custom_call.1} parent=1 // pred_check_branch
      %34 = sbr.rel (0) target = $region13
    $region12: #{tpu_custom_call.1} parent=1 // pred_region
      %s36 = ssub.s32 256, 256
      %37 = vsyncadd [#allocation4], %s36
      %s38 = sshll.u32 [#allocation5], 4
      %s39 = int_to_ptr.vmem [resolvable:$true] %s38
      %44 = dma.vmem_to_hbm [thread:$0]  %s39, 256, %s1, [#allocation4], 128, 128, 8
    $region13: #{tpu_custom_call.1} parent=1 // pred_fallthru
      _
    // Predicated region
    $region14: #{tpu_custom_call.1} parent=1 // pred_check
      _
    $region15: #{tpu_custom_call.1} parent=1 // pred_check_branch
      %46 = sbr.rel (0) target = $region17
    $region16: #{tpu_custom_call.1} parent=1 // pred_region
      %47 = dma.done [#allocation4], 256
    $region17: #{tpu_custom_call.1} parent=1 // pred_fallthru
      _
    %48 = vsyncpa [#allocation3], 1
    %49 = vsyncpa [#allocation4], 1

</llo_original>
